<compile_context>
chip_gen: v5e
topology: v5e:2x2
jax: 0.10.0
libtpu: 0.0.40
codegen_flags: <defaults>
</compile_context>

<pallas_src>
import functools

import jax
import jax.numpy as jnp
from jax.experimental import pallas as pl
from jax.experimental.pallas import tpu as pltpu


def _round_up(n, m):
    return (n + m - 1) // m * m


# ---------------------------------------------------------------------------
# Kernel
# ---------------------------------------------------------------------------
def _ffn_kernel(x_ref, gamma_ref, beta_ref, w1_ref, b1_ref, w2_ref, b2_ref,
                o_ref, xn_ref, acc_ref, *, eps, n_valid_feat, mm_dtype):
    k = pl.program_id(1)

    # ---- k == 0: LayerNorm the row tile once, cache it; zero the accumulator.
    @pl.when(k == 0)
    def _init():
        x = x_ref[...].astype(jnp.float32)                       # (tm, sizep)
        sizep = x.shape[-1]
        if n_valid_feat == sizep:
            mean = jnp.mean(x, axis=-1, keepdims=True)
            centered = x - mean
            var = jnp.mean(centered * centered, axis=-1, keepdims=True)
        else:
            # Feature dim is lane-padded with zeros: reduce over valid cols only.
            feat = jax.lax.broadcasted_iota(jnp.int32, x.shape, 1)
            mask = (feat < n_valid_feat).astype(jnp.float32)
            inv_n = 1.0 / float(n_valid_feat)
            mean = jnp.sum(x * mask, axis=-1, keepdims=True) * inv_n
            centered = (x - mean) * mask
            var = jnp.sum(centered * centered, axis=-1, keepdims=True) * inv_n
        inv = jax.lax.rsqrt(var + eps)
        xn = centered * inv * gamma_ref[...] + beta_ref[...]
        xn_ref[...] = xn.astype(mm_dtype)
        acc_ref[...] = jnp.zeros_like(acc_ref)

    # ---- hidden slice k: h = relu(xn @ W1[:, k] + b1[k]); acc += h @ W2[k, :]
    h = jnp.dot(xn_ref[...], w1_ref[...], preferred_element_type=jnp.float32)
    h = jnp.maximum(h + b1_ref[...], 0.0)                        # (tm, th) f32
    # TODO(synk): dropout_1 omitted (identity in eval mode); training dropout
    # would need pltpu.prng_seed / pltpu.prng_random_bits.
    acc_ref[...] += jnp.dot(h.astype(mm_dtype), w2_ref[...],
                            preferred_element_type=jnp.float32)

    # ---- last hidden slice: bias, residual, write out.
    @pl.when(k == pl.num_programs(1) - 1)
    def _finalize():
        # TODO(synk): dropout_2 omitted (identity in eval mode).
        y = acc_ref[...] + b2_ref[...] + x_ref[...].astype(jnp.float32)
        o_ref[...] = y.astype(o_ref.dtype)


# ---------------------------------------------------------------------------
# Parameter preparation (hoisted out of the per-call hot path; call once)
# ---------------------------------------------------------------------------
def prepare_ffn_params(gamma, beta, w1, b1, w2, b2, *,
                       matmul_dtype=jnp.bfloat16):
    """Pad to 128-lane multiples and cast weights to the matmul dtype ONCE.

    Weights are stored as (in_features, out_features) = PyTorch W^T.
    """
    size, hidden = w1.shape
    sizep = _round_up(size, 128)
    hiddenp = _round_up(hidden, 128)
    mm_dtype = jnp.dtype(matmul_dtype)

    gamma_p = jnp.pad(gamma.astype(jnp.float32), (0, sizep - size)).reshape(1, sizep)
    beta_p = jnp.pad(beta.astype(jnp.float32), (0, sizep - size)).reshape(1, sizep)
    w1_p = jnp.pad(w1.astype(mm_dtype), ((0, sizep - size), (0, hiddenp - hidden)))
    b1_p = jnp.pad(b1.astype(jnp.float32), (0, hiddenp - hidden)).reshape(1, hiddenp)
    w2_p = jnp.pad(w2.astype(mm_dtype), ((0, hiddenp - hidden), (0, sizep - size)))
    b2_p = jnp.pad(b2.astype(jnp.float32), (0, sizep - size)).reshape(1, sizep)

    return {
        "size": size, "hidden": hidden, "sizep": sizep, "hiddenp": hiddenp,
        "mm_dtype": mm_dtype,
        "gamma": gamma_p, "beta": beta_p,
        "w1": w1_p, "b1": b1_p, "w2": w2_p, "b2": b2_p,
    }


# ---------------------------------------------------------------------------
# Tile geometry / VMEM budgeting
# ---------------------------------------------------------------------------
def _vmem_clamp_bytes():
    """Generation-aware VMEM clamp: ~100 MiB on 128-MiB chips, ~56 MiB on v7x."""
    try:
        cap = int(pltpu.get_tpu_info().vmem_capacity_bytes)
    except Exception:
        cap = 64 << 20          # conservative fallback (v7x per-TC VMEM)
    if cap >= (128 << 20):      # v5e / v6e
        return 100 << 20
    return 56 << 20             # v7x: leave headroom in the 64 MiB


def _select_geometry(rows, sizep, hiddenp, x_itemsize, mm_itemsize, budget,
                     row_tile, hidden_tile):
    sublane = 8 if x_itemsize >= 4 else 16

    def act_bytes(tm):
        # double-buffered x + out tiles, plus xn / acc scratch
        return tm * sizep * (4 * x_itemsize + mm_itemsize + 4)

    def wgt_bytes(th):
        # double-buffered W1 / W2 slices + small bias / gamma / beta buffers
        return 4 * sizep * th * mm_itemsize + 2 * (th + 3 * sizep) * 4

    tm = min(_round_up(row_tile, sublane), _round_up(rows, sublane))

    if hidden_tile is not None:
        th = min(_round_up(hidden_tile, 128), hiddenp)
        while hiddenp % th:
            th -= 128
        return tm, th

    # Prefer full weight residency: constant weight index_maps -> Pallas block
    # dedup DMAs W1/W2 from HBM exactly once for the whole kernel.
    if wgt_bytes(hiddenp) + act_bytes(tm) <= budget:
        return tm, hiddenp

    # Weight-streaming fallback: weight HBM traffic ~ weights * rows/tm, so
    # grow the row tile, but keep >= 2 row tiles so the "parallel" row axis
    # still splits across both TensorCores (megacore / v7x).
    for cand_tm in (1024, 512):
        cand_tm = _round_up(cand_tm, sublane)
        if (cand_tm > tm and rows >= 2 * cand_tm
                and wgt_bytes(128) + act_bytes(cand_tm) <= budget):
            tm = cand_tm
            break

    th = 128
    for cand in (1024, 512, 256):
        if hiddenp % cand == 0 and wgt_bytes(cand) + act_bytes(tm) <= budget:
            th = cand
            break
    return tm, th


# ---------------------------------------------------------------------------
# Forward
# ---------------------------------------------------------------------------
def positionwise_feed_forward(x, params, *, eps=1e-6, row_tile=256,
                              hidden_tile=None):
    """x: (batch, seq, size).  params: output of prepare_ffn_params."""
    batch, seq, size = x.shape
    assert size == params["size"], "feature dim mismatch with prepared params"
    hidden = params["hidden"]
    sizep, hiddenp = params["sizep"], params["hiddenp"]
    mm_dtype = params["mm_dtype"]
    rows = batch * seq

    xb = jnp.dtype(x.dtype).itemsize
    mb = jnp.dtype(mm_dtype).itemsize
    clamp = _vmem_clamp_bytes()

    tm, th = _select_geometry(rows, sizep, hiddenp, xb, mb, clamp,
                              row_tile, hidden_tile)
    rowsp = _round_up(rows, tm)

    x2 = x.reshape(rows, size)
    if rowsp != rows or sizep != size:
        x2 = jnp.pad(x2, ((0, rowsp - rows), (0, sizep - size)))

    grid = (rowsp // tm, hiddenp // th)

    # --- explicit VMEM budget & truthful cost hint ---
    vmem_est = (tm * sizep * (4 * xb + mb + 4)
                + 4 * sizep * th * mb + 2 * (th + 3 * sizep) * 4)
    vmem_limit = int(min(max(vmem_est * 5 // 4 + (2 << 20), 16 << 20), clamp))

    weight_passes = 1 if th == hiddenp else (rowsp // tm)
    cost = pl.CostEstimate(
        flops=4 * rows * size * hidden,
        transcendentals=rows,
        bytes_accessed=int(
            2 * rowsp * sizep * xb
            + weight_passes * (params["w1"].size + params["w2"].size) * mb
            + (params["gamma"].size + params["beta"].size
               + params["b1"].size + params["b2"].size) * 4),
    )

    out = pl.pallas_call(
        functools.partial(_ffn_kernel, eps=eps, n_valid_feat=size,
                          mm_dtype=mm_dtype),
        out_shape=jax.ShapeDtypeStruct((rowsp, sizep), x.dtype),
        grid_spec=pltpu.PrefetchScalarGridSpec(
            num_scalar_prefetch=0,
            grid=grid,
            in_specs=[
                pl.BlockSpec((tm, sizep), lambda i, k: (i, 0)),    # x rows
                pl.BlockSpec((1, sizep), lambda i, k: (0, 0)),     # gamma
                pl.BlockSpec((1, sizep), lambda i, k: (0, 0)),     # beta
                pl.BlockSpec((sizep, th), lambda i, k: (0, k)),    # W1 slice
                pl.BlockSpec((1, th), lambda i, k: (0, k)),        # b1 slice
                pl.BlockSpec((th, sizep), lambda i, k: (k, 0)),    # W2 slice
                pl.BlockSpec((1, sizep), lambda i, k: (0, 0)),     # b2
            ],
            out_specs=pl.BlockSpec((tm, sizep), lambda i, k: (i, 0)),
            scratch_shapes=[
                pltpu.VMEM((tm, sizep), mm_dtype),                 # cached LN(x)
                pltpu.VMEM((tm, sizep), jnp.float32),              # y accumulator
            ],
        ),
        compiler_params=pltpu.CompilerParams(
            dimension_semantics=("parallel", "arbitrary"),
            vmem_limit_bytes=vmem_limit),
        cost_estimate=cost,
    )(x2, params["gamma"], params["beta"], params["w1"], params["b1"],
      params["w2"], params["b2"])

    return out[:rows, :size].reshape(batch, seq, size)


# ---------------------------------------------------------------------------
# Reference & demo
# ---------------------------------------------------------------------------
def _reference(x, gamma, beta, w1, b1, w2, b2, eps=1e-6):
    mean = jnp.mean(x, axis=-1, keepdims=True)
    var = jnp.mean((x - mean) ** 2, axis=-1, keepdims=True)
    xn = (x - mean) * jax.lax.rsqrt(var + eps) * gamma + beta
    h = jnp.maximum(xn @ w1 + b1, 0.0)
    return h @ w2 + b2 + x


if __name__ == "__main__":
    batch, seq, size, hidden = 2, 8, 32, 64

    key = jax.random.PRNGKey(0)
    kx, kg, kb, k1, kb1, k2, kb2 = jax.random.split(key, 7)

    x = jax.random.normal(kx, (batch, seq, size), dtype=jnp.float32)
    # LayerNorm params (onmt LayerNorm: a_2 init ones, b_2 init zeros; perturb
    # slightly so they actually matter, deterministically).
    gamma = 1.0 + 0.01 * jax.random.normal(kg, (size,), dtype=jnp.float32)
    beta = 0.01 * jax.random.normal(kb, (size,), dtype=jnp.float32)
    # Linear weights stored as (in_features, out_features) = PyTorch W^T.
    w1 = jax.random.normal(k1, (size, hidden), dtype=jnp.float32) * 0.1
    b1 = jax.random.normal(kb1, (hidden,), dtype=jnp.float32) * 0.1
    w2 = jax.random.normal(k2, (hidden, size), dtype=jnp.float32) * 0.1
    b2 = jax.random.normal(kb2, (size,), dtype=jnp.float32) * 0.1

    ref = _reference(x, gamma, beta, w1, b1, w2, b2)

    # 1) f32 matmul inputs: bit-tight check of the kernel math.
    params_f32 = prepare_ffn_params(gamma, beta, w1, b1, w2, b2,
                                    matmul_dtype=jnp.float32)
    out_f32 = positionwise_feed_forward(x, params_f32)
    jax.block_until_ready(out_f32)
    assert out_f32.shape == x.shape
    assert jnp.allclose(out_f32, ref, atol=1e-4, rtol=1e-4)

    # 2) default (performance) config: bf16 matmul inputs, f32 accumulation.
    params_bf16 = prepare_ffn_params(gamma, beta, w1, b1, w2, b2)
    out_bf16 = positionwise_feed_forward(x, params_bf16)
    jax.block_until_ready(out_bf16)
    assert out_bf16.shape == x.shape
    assert jnp.allclose(out_bf16, ref, atol=5e-2, rtol=5e-2)

    print("KERNEL_OK")
</pallas_src>

<mosaic_0001>
module attributes {stable_mosaic.version = 11 : i64} {
  func.func @_ffn_kernel(%arg0: i32, %arg1: i32, %arg2: memref<16x128xf32, #tpu.memory_space<vmem>>, %arg3: memref<1x128xf32, #tpu.memory_space<vmem>>, %arg4: memref<1x128xf32, #tpu.memory_space<vmem>>, %arg5: memref<128x128xf32, #tpu.memory_space<vmem>>, %arg6: memref<1x128xf32, #tpu.memory_space<vmem>>, %arg7: memref<128x128xf32, #tpu.memory_space<vmem>>, %arg8: memref<1x128xf32, #tpu.memory_space<vmem>>, %arg9: memref<16x128xf32, #tpu.memory_space<vmem>>, %arg10: memref<16x128xf32, #tpu.memory_space<vmem>>, %arg11: memref<16x128xf32, #tpu.memory_space<vmem>>) attributes {dimension_semantics = [#tpu.dimension_semantics<parallel>, #tpu.dimension_semantics<arbitrary>], iteration_bounds = array<i64: 1, 1>, scalar_prefetch = 0 : i64, scratch_operands = 2 : i64, tpu.core_type = #tpu.core_type<tc>, window_params = [{transform_indices = @transform_0, window_bounds = array<i64: 16, 128>}, {pipeline_mode = #tpu.pipeline_mode<synchronous>, transform_indices = @transform_1, window_bounds = array<i64: 1, 128>}, {pipeline_mode = #tpu.pipeline_mode<synchronous>, transform_indices = @transform_2, window_bounds = array<i64: 1, 128>}, {transform_indices = @transform_3, window_bounds = array<i64: 128, 128>}, {transform_indices = @transform_4, window_bounds = array<i64: 1, 128>}, {transform_indices = @transform_5, window_bounds = array<i64: 128, 128>}, {pipeline_mode = #tpu.pipeline_mode<synchronous>, transform_indices = @transform_6, window_bounds = array<i64: 1, 128>}, {transform_indices = @transform_7, window_bounds = array<i64: 16, 128>}]} {
    %c0_i32 = arith.constant 0 : i32
    %0 = arith.cmpi eq, %arg1, %c0_i32 : i32
    %1 = arith.extui %0 : i1 to i32
    %c0_i32_0 = arith.constant 0 : i32
    %2 = arith.cmpi ne, %1, %c0_i32_0 : i32
    scf.if %2 {
      %c0_16 = arith.constant 0 : index
      %c0_17 = arith.constant 0 : index
      %19 = vector.load %arg2[%c0_16, %c0_17] : memref<16x128xf32, #tpu.memory_space<vmem>>, vector<16x128xf32>
      %20 = tpu.iota {dimensions = array<i32: 1>} : vector<16x128xi32>
      %c32_i32 = arith.constant 32 : i32
      %21 = vector.broadcast %c32_i32 : i32 to vector<16x128xi32>
      %22 = arith.cmpi slt, %20, %21 : vector<16x128xi32>
      %23 = arith.extui %22 : vector<16x128xi1> to vector<16x128xi32>
      %24 = arith.sitofp %23 : vector<16x128xi32> to vector<16x128xf32>
      %25 = arith.mulf %19, %24 : vector<16x128xf32>
      %cst_18 = arith.constant dense<0.000000e+00> : vector<16xf32>
      %26 = vector.multi_reduction <add>, %25, %cst_18 [1] : vector<16x128xf32> to vector<16xf32>
      %27 = vector.shape_cast %26 : vector<16xf32> to vector<16x1xf32>
      %cst_19 = arith.constant 3.125000e-02 : f32
      %28 = vector.broadcast %cst_19 : f32 to vector<16x1xf32>
      %29 = arith.mulf %27, %28 : vector<16x1xf32>
      %30 = vector.broadcast %29 : vector<16x1xf32> to vector<16x128xf32>
      %31 = arith.subf %19, %30 : vector<16x128xf32>
      %32 = arith.mulf %31, %24 : vector<16x128xf32>
      %33 = arith.mulf %32, %32 : vector<16x128xf32>
      %cst_20 = arith.constant dense<0.000000e+00> : vector<16xf32>
      %34 = vector.multi_reduction <add>, %33, %cst_20 [1] : vector<16x128xf32> to vector<16xf32>
      %35 = vector.shape_cast %34 : vector<16xf32> to vector<16x1xf32>
      %cst_21 = arith.constant 3.125000e-02 : f32
      %36 = vector.broadcast %cst_21 : f32 to vector<16x1xf32>
      %37 = arith.mulf %35, %36 : vector<16x1xf32>
      %cst_22 = arith.constant 9.99999997E-7 : f32
      %38 = vector.broadcast %cst_22 : f32 to vector<16x1xf32>
      %39 = arith.addf %37, %38 : vector<16x1xf32>
      %40 = math.rsqrt %39 : vector<16x1xf32>
      %41 = vector.broadcast %40 : vector<16x1xf32> to vector<16x128xf32>
      %42 = arith.mulf %32, %41 : vector<16x128xf32>
      %c0_23 = arith.constant 0 : index
      %c0_24 = arith.constant 0 : index
      %43 = vector.load %arg3[%c0_23, %c0_24] : memref<1x128xf32, #tpu.memory_space<vmem>>, vector<1x128xf32>
      %44 = vector.broadcast %43 : vector<1x128xf32> to vector<16x128xf32>
      %45 = arith.mulf %42, %44 : vector<16x128xf32>
      %c0_25 = arith.constant 0 : index
      %c0_26 = arith.constant 0 : index
      %46 = vector.load %arg4[%c0_25, %c0_26] : memref<1x128xf32, #tpu.memory_space<vmem>>, vector<1x128xf32>
      %47 = vector.broadcast %46 : vector<1x128xf32> to vector<16x128xf32>
      %48 = arith.addf %45, %47 : vector<16x128xf32>
      %c0_27 = arith.constant 0 : index
      %c0_28 = arith.constant 0 : index
      %49 = vector.load %arg10[%c0_27, %c0_28] : memref<16x128xf32, #tpu.memory_space<vmem>>, vector<16x128xf32>
      tpu.vector_store %arg10[%c0_27, %c0_28], %48 {strides = array<i32>} : memref<16x128xf32, #tpu.memory_space<vmem>>, vector<16x128xf32>,
      %cst_29 = arith.constant 0.000000e+00 : f32
      %50 = vector.broadcast %cst_29 : f32 to vector<16x128xf32>
      %c0_30 = arith.constant 0 : index
      %c0_31 = arith.constant 0 : index
      %51 = vector.load %arg11[%c0_30, %c0_31] : memref<16x128xf32, #tpu.memory_space<vmem>>, vector<16x128xf32>
      tpu.vector_store %arg11[%c0_30, %c0_31], %50 {strides = array<i32>} : memref<16x128xf32, #tpu.memory_space<vmem>>, vector<16x128xf32>,
    } else {
    }
    %c0 = arith.constant 0 : index
    %c0_1 = arith.constant 0 : index
    %3 = vector.load %arg10[%c0, %c0_1] : memref<16x128xf32, #tpu.memory_space<vmem>>, vector<16x128xf32>
    %c0_2 = arith.constant 0 : index
    %c0_3 = arith.constant 0 : index
    %4 = vector.load %arg5[%c0_2, %c0_3] : memref<128x128xf32, #tpu.memory_space<vmem>>, vector<128x128xf32>
    %cst = arith.constant dense<0.000000e+00> : vector<16x128xf32>
    %5 = tpu.matmul %3, %4, %cst {dimension_numbers = #tpu.dot_dimension_numbers<[1], [0], [0], [1], [0, 0, 1, 1], [], []>} : vector<16x128xf32>, vector<128x128xf32>, vector<16x128xf32> -> vector<16x128xf32>
    %c0_4 = arith.constant 0 : index
    %c0_5 = arith.constant 0 : index
    %6 = vector.load %arg6[%c0_4, %c0_5] : memref<1x128xf32, #tpu.memory_space<vmem>>, vector<1x128xf32>
    %7 = vector.broadcast %6 : vector<1x128xf32> to vector<16x128xf32>
    %8 = arith.addf %5, %7 : vector<16x128xf32>
    %cst_6 = arith.constant 0.000000e+00 : f32
    %9 = vector.broadcast %cst_6 : f32 to vector<16x128xf32>
    %10 = arith.maximumf %8, %9 : vector<16x128xf32>
    %c0_7 = arith.constant 0 : index
    %c0_8 = arith.constant 0 : index
    %11 = vector.load %arg11[%c0_7, %c0_8] : memref<16x128xf32, #tpu.memory_space<vmem>>, vector<16x128xf32>
    %c0_9 = arith.constant 0 : index
    %c0_10 = arith.constant 0 : index
    %12 = vector.load %arg7[%c0_9, %c0_10] : memref<128x128xf32, #tpu.memory_space<vmem>>, vector<128x128xf32>
    %cst_11 = arith.constant dense<0.000000e+00> : vector<16x128xf32>
    %13 = tpu.matmul %10, %12, %cst_11 {dimension_numbers = #tpu.dot_dimension_numbers<[1], [0], [0], [1], [0, 0, 1, 1], [], []>} : vector<16x128xf32>, vector<128x128xf32>, vector<16x128xf32> -> vector<16x128xf32>
    %14 = arith.addf %11, %13 : vector<16x128xf32>
    %c0_12 = arith.constant 0 : index
    %c0_13 = arith.constant 0 : index
    %15 = vector.load %arg11[%c0_12, %c0_13] : memref<16x128xf32, #tpu.memory_space<vmem>>, vector<16x128xf32>
    tpu.vector_store %arg11[%c0_12, %c0_13], %14 {strides = array<i32>} : memref<16x128xf32, #tpu.memory_space<vmem>>, vector<16x128xf32>,
    %c0_i32_14 = arith.constant 0 : i32
    %16 = arith.cmpi eq, %arg1, %c0_i32_14 : i32
    %17 = arith.extui %16 : i1 to i32
    %c0_i32_15 = arith.constant 0 : i32
    %18 = arith.cmpi ne, %17, %c0_i32_15 : i32
    scf.if %18 {
      %c0_16 = arith.constant 0 : index
      %c0_17 = arith.constant 0 : index
      %19 = vector.load %arg11[%c0_16, %c0_17] : memref<16x128xf32, #tpu.memory_space<vmem>>, vector<16x128xf32>
      %c0_18 = arith.constant 0 : index
      %c0_19 = arith.constant 0 : index
      %20 = vector.load %arg8[%c0_18, %c0_19] : memref<1x128xf32, #tpu.memory_space<vmem>>, vector<1x128xf32>
      %21 = vector.broadcast %20 : vector<1x128xf32> to vector<16x128xf32>
      %22 = arith.addf %19, %21 : vector<16x128xf32>
      %c0_20 = arith.constant 0 : index
      %c0_21 = arith.constant 0 : index
      %23 = vector.load %arg2[%c0_20, %c0_21] : memref<16x128xf32, #tpu.memory_space<vmem>>, vector<16x128xf32>
      %24 = arith.addf %22, %23 : vector<16x128xf32>
      %c0_22 = arith.constant 0 : index
      %c0_23 = arith.constant 0 : index
      %25 = vector.load %arg9[%c0_22, %c0_23] : memref<16x128xf32, #tpu.memory_space<vmem>>, vector<16x128xf32>
      tpu.vector_store %arg9[%c0_22, %c0_23], %24 {strides = array<i32>} : memref<16x128xf32, #tpu.memory_space<vmem>>, vector<16x128xf32>,
    } else {
    }
    return
  }
  func.func @transform_0(%arg0: i32, %arg1: i32) -> (i32, i32) {
    %c0_i32 = arith.constant 0 : i32
    %c0_i32_0 = arith.constant 0 : i32
    return %arg0, %c0_i32 : i32, i32
  }
  func.func @transform_1(%arg0: i32, %arg1: i32) -> (i32, i32) {
    %c0_i32 = arith.constant 0 : i32
    %c0_i32_0 = arith.constant 0 : i32
    %c0_i32_1 = arith.constant 0 : i32
    return %c0_i32, %c0_i32_0 : i32, i32
  }
  func.func @transform_2(%arg0: i32, %arg1: i32) -> (i32, i32) {
    %c0_i32 = arith.constant 0 : i32
    %c0_i32_0 = arith.constant 0 : i32
    %c0_i32_1 = arith.constant 0 : i32
    return %c0_i32, %c0_i32_0 : i32, i32
  }
  func.func @transform_3(%arg0: i32, %arg1: i32) -> (i32, i32) {
    %c0_i32 = arith.constant 0 : i32
    %c0_i32_0 = arith.constant 0 : i32
    return %c0_i32, %arg1 : i32, i32
  }
  func.func @transform_4(%arg0: i32, %arg1: i32) -> (i32, i32) {
    %c0_i32 = arith.constant 0 : i32
    %c0_i32_0 = arith.constant 0 : i32
    return %c0_i32, %arg1 : i32, i32
  }
  func.func @transform_5(%arg0: i32, %arg1: i32) -> (i32, i32) {
    %c0_i32 = arith.constant 0 : i32
    %c0_i32_0 = arith.constant 0 : i32
    return %arg1, %c0_i32 : i32, i32
  }
  func.func @transform_6(%arg0: i32, %arg1: i32) -> (i32, i32) {
    %c0_i32 = arith.constant 0 : i32
    %c0_i32_0 = arith.constant 0 : i32
    %c0_i32_1 = arith.constant 0 : i32
    return %c0_i32, %c0_i32_0 : i32, i32
  }
  func.func @transform_7(%arg0: i32, %arg1: i32) -> (i32, i32) {
    %c0_i32 = arith.constant 0 : i32
    %c0_i32_0 = arith.constant 0 : i32
    return %arg0, %c0_i32 : i32, i32
  }
}

</mosaic_0001>

<llo_original>
// kernel: tpu_custom_call.1
$region0: #{tpu_custom_call.1}
  #allocation0 [shape = 'u32[]', space=smem, size = 0x4, offset = 0x4, fixed_abs, tag = 'smem constant byte address 0x4 - core index']
  #allocation1 [shape = 'u32[72,128]{1,0:T(1,128)}', space=vmem, size = 0x9000, scoped, tag = 'internal scratch']
  #allocation2 [shape = 'f32[16,128]{1,0:T(8,128)}', space=vmem, size = 0x2000, scoped, tag = 'scratch operand']
  #allocation3 [shape = 'f32[16,128]{1,0:T(8,128)}', space=vmem, size = 0x2000, scoped, tag = 'scratch operand']
  %s0 = inlined_call_operand.hbm [shape: f32[16,128], index: 0, kind: input, shape index: {}]
  %s1 = inlined_call_operand.hbm [shape: f32[1,128], index: 1, kind: input, shape index: {}]
  %s2 = inlined_call_operand.vmem [shape: f32[1,128], index: 2, kind: input, shape index: {}]
  %s3 = inlined_call_operand.hbm [shape: f32[128,128], index: 3, kind: input, shape index: {}]
  %s4 = inlined_call_operand.vmem [shape: f32[1,128], index: 4, kind: input, shape index: {}]
  %s5 = inlined_call_operand.hbm [shape: f32[128,128], index: 5, kind: input, shape index: {}]
  %s6 = inlined_call_operand.vmem [shape: f32[1,128], index: 6, kind: input, shape index: {}]
  %s7 = inlined_call_operand.hbm [shape: f32[16,128], index: 7, kind: output, shape index: {}]
  %s8 = sld [smem:[#allocation0]]
  $region62: #{tpu_custom_call.1} parent=0
    _
  %s10 = ssub.s32 1, %s8
  %s11 = scalar_select 0, %s10, %s8
  $region1: #{tpu_custom_call.1} parent=0
    #allocation4 [shape = 'u8[8192]{0}', space=vmem, size = 0x2000, scoped, tag = 'input window, operand 0, single buffered']
    #allocation5 [shape = 's32[1]{0}', space=sflag, size = 0x4, scoped, tag = 'scoped memory for tpu_custom_call.1']
    #allocation6 [shape = 's32[1]{0}', space=sflag, size = 0x4, scoped, tag = 'scoped memory for tpu_custom_call.1']
    #allocation7 [shape = 'u8[512]{0}', space=vmem, size = 0x400, scoped, tag = 'input window, operand 1, single buffered']
    #allocation8 [shape = 's32[1]{0}', space=sflag, size = 0x4, scoped, tag = 'scoped memory for tpu_custom_call.1']
    #allocation9 [shape = 'u8[65536]{0}', space=vmem, size = 0x10000, scoped, tag = 'input window, operand 3, single buffered']
    #allocation10 [shape = 'u8[65536]{0}', space=vmem, size = 0x10000, scoped, tag = 'input window, operand 5, single buffered']
    #allocation11 [shape = 's32[1]{0}', space=sflag, size = 0x4, scoped, tag = 'scoped memory for tpu_custom_call.1']
    #allocation12 [shape = 'u8[8192]{0}', space=vmem, size = 0x2000, scoped, tag = 'output window, operand 0, single buffered']
    %12 = vsyncpa [#allocation5], 0
    %13 = vsyncpa [#allocation8], 0
    %14 = vsyncpa [#allocation11], 0
    %15 = vsyncpa [#allocation6], 0
    // Predicated region
    $region2: #{tpu_custom_call.1} parent=1 // pred_check
      _
    $region3: #{tpu_custom_call.1} parent=1 // pred_check_branch
      %17 = sbr.rel (0) target = $region5
    $region4: #{tpu_custom_call.1} parent=1 // pred_region
      %19 = vsyncadd [#allocation5], 0
      %s20 = sshll.u32 %s0, 4
      %s21 = int_to_ptr.hbm [resolvable:$true] %s20
      %s22 = sshll.u32 [#allocation4], 4
      %s23 = int_to_ptr.vmem [resolvable:$true] %s22
      %28 = dma.hbm_to_vmem [thread:$0]  %s21, 256, %s23, [#allocation5], 128, 128, 8
    $region5: #{tpu_custom_call.1} parent=1 // pred_fallthru
      _
    // Predicated region
    $region6: #{tpu_custom_call.1} parent=1 // pred_check
      _
    $region7: #{tpu_custom_call.1} parent=1 // pred_check_branch
      %30 = sbr.rel (0) target = $region9
    $region8: #{tpu_custom_call.1} parent=1 // pred_region
      %32 = vsyncadd [#allocation8], 0
      %s34 = sshll.u32 %s1, 4
      %s35 = int_to_ptr.hbm [resolvable:$true] %s34
      %s36 = sshll.u32 [#allocation7], 4
      %s37 = int_to_ptr.vmem [resolvable:$true] %s36
      %39 = dma.hbm_to_vmem [thread:$0]  %s35, 16, %s37, [#allocation8]
    $region9: #{tpu_custom_call.1} parent=1 // pred_fallthru
      _
    // Predicated region
    $region10: #{tpu_custom_call.1} parent=1 // pred_check
      _
    $region11: #{tpu_custom_call.1} parent=1 // pred_check_branch
      %41 = sbr.rel (0) target = $region13
    $region12: #{tpu_custom_call.1} parent=1 // pred_region
      _
    $region13: #{tpu_custom_call.1} parent=1 // pred_fallthru
      _
    // Predicated region
    $region14: #{tpu_custom_call.1} parent=1 // pred_check
      _
    $region15: #{tpu_custom_call.1} parent=1 // pred_check_branch
      %43 = sbr.rel (0) target = $region17
    $region16: #{tpu_custom_call.1} parent=1 // pred_region
      %45 = vsyncadd [#allocation8], 0
      %s46 = sshll.u32 %s3, 4
      %s47 = int_to_ptr.hbm [resolvable:$true] %s46
      %s48 = sshll.u32 [#allocation9], 4
      %s49 = int_to_ptr.vmem [resolvable:$true] %s48
      %54 = dma.hbm_to_vmem [thread:$0]  %s47, 2048, %s49, [#allocation8], 128, 128, 8
    $region17: #{tpu_custom_call.1} parent=1 // pred_fallthru
      _
    // Predicated region
    $region18: #{tpu_custom_call.1} parent=1 // pred_check
      _
    $region19: #{tpu_custom_call.1} parent=1 // pred_check_branch
      %56 = sbr.rel (0) target = $region21
    $region20: #{tpu_custom_call.1} parent=1 // pred_region
      _
    $region21: #{tpu_custom_call.1} parent=1 // pred_fallthru
      _
    // Predicated region
    $region22: #{tpu_custom_call.1} parent=1 // pred_check
      _
    $region23: #{tpu_custom_call.1} parent=1 // pred_check_branch
      %58 = sbr.rel (0) target = $region25
    $region24: #{tpu_custom_call.1} parent=1 // pred_region
      %60 = vsyncadd [#allocation11], 0
      %s61 = sshll.u32 %s5, 4
      %s62 = int_to_ptr.hbm [resolvable:$true] %s61
      %s63 = sshll.u32 [#allocation10], 4
      %s64 = int_to_ptr.vmem [resolvable:$true] %s63
      %69 = dma.hbm_to_vmem [thread:$0]  %s62, 2048, %s64, [#allocation11], 128, 128, 8
    $region25: #{tpu_custom_call.1} parent=1 // pred_fallthru
      _
    // Predicated region
    $region26: #{tpu_custom_call.1} parent=1 // pred_check
      _
    $region27: #{tpu_custom_call.1} parent=1 // pred_check_branch
      %71 = sbr.rel (0) target = $region29
    $region28: #{tpu_custom_call.1} parent=1 // pred_region
      _
    $region29: #{tpu_custom_call.1} parent=1 // pred_fallthru
      _
    // Predicated region
    $region30: #{tpu_custom_call.1} parent=1 // pred_check
      _
    $region31: #{tpu_custom_call.1} parent=1 // pred_check_branch
      %73 = sbr.rel (0) target = $region33
    $region32: #{tpu_custom_call.1} parent=1 // pred_region
      %75 = dma.done [#allocation5], 256
    $region33: #{tpu_custom_call.1} parent=1 // pred_fallthru
      _
    // Predicated region
    $region34: #{tpu_custom_call.1} parent=1 // pred_check
      _
    $region35: #{tpu_custom_call.1} parent=1 // pred_check_branch
      %77 = sbr.rel (0) target = $region37
    $region36: #{tpu_custom_call.1} parent=1 // pred_region
      %79 = dma.done [#allocation8], 16
    $region37: #{tpu_custom_call.1} parent=1 // pred_fallthru
      _
    // Predicated region
    $region38: #{tpu_custom_call.1} parent=1 // pred_check
      _
    $region39: #{tpu_custom_call.1} parent=1 // pred_check_branch
      %81 = sbr.rel (0) target = $region41
    $region40: #{tpu_custom_call.1} parent=1 // pred_region
      %83 = dma.done [#allocation8], 2048
    $region41: #{tpu_custom_call.1} parent=1 // pred_fallthru
      _
    // Predicated region
    $region42: #{tpu_custom_call.1} parent=1 // pred_check
      _
    $region43: #{tpu_custom_call.1} parent=1 // pred_check_branch
      %85 = sbr.rel (0) target = $region45
    $region44: #{tpu_custom_call.1} parent=1 // pred_region
      %87 = dma.done [#allocation11], 2048
    $region45: #{tpu_custom_call.1} parent=1 // pred_fallthru
      _
    %p88 = scmp.eq.s32.totalorder 0, 0
    // Predicated region
    $region46: #{tpu_custom_call.1} parent=1 // pred_check
      %p89 = pneg %p88
    $region47: #{tpu_custom_call.1} parent=1 // pred_check_branch
      %91 = sbr.rel (%p89) target = $region49
    $region48: #{tpu_custom_call.1} parent=1 // pred_region
      %v92 = vld [vmem:[#allocation4] sm:$0xff]
      %v93 = vld [vmem:[#allocation4 + $0x8] sm:$0xff]
      %v94 = vlaneseq
      %v95 = vand.u32 %v94, 127
      %vm96 = vcmp.lt.s32.totalorder %v95, 32
      %v97 = vsel %vm96, 1, 0
      %v98 = vcvt.s32.f32 %v97
      %v99 = vmul.f32 %v92, %v98
      %v100 = vmul.f32 %v93, %v98
      %101 = vadd.xlane.f32.xlu0 %v99
      %v102 = vpop.xlane.xlu0 %101
      %103 = vadd.xlane.f32.xlu0 %v100
      %v104 = vpop.xlane.xlu0 %103
      %v105 = vmul.f32 %v102, 0.03125
      %v106 = vmul.f32 %v104, 0.03125
      %v107 = vsub.f32 %v92, %v105
      %v108 = vsub.f32 %v93, %v106
      %v109 = vmul.f32 %v107, %v98
      %v110 = vmul.f32 %v108, %v98
      %v111 = vmul.f32 %v109, %v109
      %v112 = vmul.f32 %v110, %v110
      %113 = vadd.xlane.f32.xlu0 %v111
      %v114 = vpop.xlane.xlu0 %113
      %115 = vadd.xlane.f32.xlu0 %v112
      %v116 = vpop.xlane.xlu0 %115
      %v117 = vmul.f32 %v114, 0.03125
      %v118 = vmul.f32 %v116, 0.03125
      %v119 = vadd.f32 %v117, 1e-06
      %v120 = vadd.f32 %v118, 1e-06
      %v121 = vrsqrt.pop %v119
      %v122 = vmul.f32 %v121, %v119
      %v123 = vmul.f32 %v122, %v121
      %v124 = vmul.f32 0.5, %v123
      %v125 = vsub.f32 1.5, %v124
      %v126 = vmul.f32 %v121, %v125
      %vm127 = vweird.f32 %v119
      %vm128 = vweird.f32 %v121
      %vm129 = vmor %vm127, %vm128
      %v130 = vsel %vm129, %v121, %v126
      %v131 = vrsqrt.pop %v120
      %v132 = vmul.f32 %v131, %v120
      %v133 = vmul.f32 %v132, %v131
      %v134 = vmul.f32 0.5, %v133
      %v135 = vsub.f32 1.5, %v134
      %v136 = vmul.f32 %v131, %v135
      %vm137 = vweird.f32 %v120
      %vm138 = vweird.f32 %v131
      %vm139 = vmor %vm137, %vm138
      %v140 = vsel %vm139, %v131, %v136
      %v141 = vmul.f32 %v109, %v130
      %v142 = vmul.f32 %v110, %v140
      %v143 = vld [vmem:[#allocation7] sm:$0x1]
      %v145 = vperm.slane %v143, 0
      %v147 = vmul.f32 %v141, %v145
      %v148 = vmul.f32 %v142, %v145
      %v149 = vld [vmem:[%s2] sm:$0x1]
      %v151 = vperm.slane %v149, 0
      %v153 = vadd.f32 %v147, %v151
      %v154 = vadd.f32 %v148, %v151
      %155 = vst [vmem:[#allocation2] sm:$0xff] %v153
      %156 = vst [vmem:[#allocation2 + $0x8] sm:$0xff] %v154
      %157 = vst [vmem:[#allocation3] sm:$0xff] 0.0
      %158 = vst [vmem:[#allocation3 + $0x8] sm:$0xff] 0.0
    $region49: #{tpu_custom_call.1} parent=1 // pred_fallthru
      _
    %v159 = vld [vmem:[#allocation2] sm:$0xff]
    %v160 = vld [vmem:[#allocation2 + $0x8] sm:$0xff]
    %v161 = vld [vmem:[#allocation9] sm:$0xff]
    %v162 = vld [vmem:[#allocation9 + $0x8] sm:$0xff]
    %v163 = vld [vmem:[#allocation9 + $0x10] sm:$0xff]
    %v164 = vld [vmem:[#allocation9 + $0x18] sm:$0xff]
    %v165 = vld [vmem:[#allocation9 + $0x20] sm:$0xff]
    %v166 = vld [vmem:[#allocation9 + $0x28] sm:$0xff]
    %v167 = vld [vmem:[#allocation9 + $0x30] sm:$0xff]
    %v168 = vld [vmem:[#allocation9 + $0x38] sm:$0xff]
    %v169 = vld [vmem:[#allocation9 + $0x40] sm:$0xff]
    %v170 = vld [vmem:[#allocation9 + $0x48] sm:$0xff]
    %v171 = vld [vmem:[#allocation9 + $0x50] sm:$0xff]
    %v172 = vld [vmem:[#allocation9 + $0x58] sm:$0xff]
    %v173 = vld [vmem:[#allocation9 + $0x60] sm:$0xff]
    %v174 = vld [vmem:[#allocation9 + $0x68] sm:$0xff]
    %v175 = vld [vmem:[#allocation9 + $0x70] sm:$0xff]
    %v176 = vld [vmem:[#allocation9 + $0x78] sm:$0xff]
    %v177 = vld [vmem:[%s4] sm:$0x1]
    %v179 = vperm.slane %v177, 0
    %181 = vmatpush.msra.mxu0 %v176
    %182 = vmatpush.msra.mxu0 %v175
    %183 = vmatpush.msra.mxu0 %v174
    %184 = vmatpush.msra.mxu0 %v173
    %185 = vmatpush.msra.mxu0 %v172
    %186 = vmatpush.msra.mxu0 %v171
    %187 = vmatpush.msra.mxu0 %v170
    %188 = vmatpush.msra.mxu0 %v169
    %189 = vmatpush.msra.mxu0 %v168
    %190 = vmatpush.msra.mxu0 %v167
    %191 = vmatpush.msra.mxu0 %v166
    %192 = vmatpush.msra.mxu0 %v165
    %193 = vmatpush.msra.mxu0 %v164
    %194 = vmatpush.msra.mxu0 %v163
    %195 = vmatpush.msra.mxu0 %v162
    %196 = vmatpush.msra.mxu0 %v161
    %197 = vmatmul.f32.gmra.mxu0 %v159
    %v198 = vpop.f32.mrf.mxu0
    %v199 = vadd.f32 %v179, %v198
    %200 = vmatmul.f32.gmra.mxu0 %v160
    %v201 = vpop.f32.mrf.mxu0
    %v202 = vadd.f32 %v179, %v201
    %203 = vdwg.mxu0
    %v204 = vmax.f32 %v199, 0.0
    %v205 = vmax.f32 %v202, 0.0
    %v206 = vld [vmem:[#allocation3] sm:$0xff]
    %v207 = vld [vmem:[#allocation3 + $0x8] sm:$0xff]
    %v208 = vld [vmem:[#allocation10] sm:$0xff]
    %v209 = vld [vmem:[#allocation10 + $0x8] sm:$0xff]
    %v210 = vld [vmem:[#allocation10 + $0x10] sm:$0xff]
    %v211 = vld [vmem:[#allocation10 + $0x18] sm:$0xff]
    %v212 = vld [vmem:[#allocation10 + $0x20] sm:$0xff]
    %v213 = vld [vmem:[#allocation10 + $0x28] sm:$0xff]
    %v214 = vld [vmem:[#allocation10 + $0x30] sm:$0xff]
    %v215 = vld [vmem:[#allocation10 + $0x38] sm:$0xff]
    %v216 = vld [vmem:[#allocation10 + $0x40] sm:$0xff]
    %v217 = vld [vmem:[#allocation10 + $0x48] sm:$0xff]
    %v218 = vld [vmem:[#allocation10 + $0x50] sm:$0xff]
    %v219 = vld [vmem:[#allocation10 + $0x58] sm:$0xff]
    %v220 = vld [vmem:[#allocation10 + $0x60] sm:$0xff]
    %v221 = vld [vmem:[#allocation10 + $0x68] sm:$0xff]
    %v222 = vld [vmem:[#allocation10 + $0x70] sm:$0xff]
    %v223 = vld [vmem:[#allocation10 + $0x78] sm:$0xff]
    %224 = vmatpush.msra.mxu0 %v223
    %225 = vmatpush.msra.mxu0 %v222
    %226 = vmatpush.msra.mxu0 %v221
    %227 = vmatpush.msra.mxu0 %v220
    %228 = vmatpush.msra.mxu0 %v219
    %229 = vmatpush.msra.mxu0 %v218
    %230 = vmatpush.msra.mxu0 %v217
    %231 = vmatpush.msra.mxu0 %v216
    %232 = vmatpush.msra.mxu0 %v215
    %233 = vmatpush.msra.mxu0 %v214
    %234 = vmatpush.msra.mxu0 %v213
    %235 = vmatpush.msra.mxu0 %v212
    %236 = vmatpush.msra.mxu0 %v211
    %237 = vmatpush.msra.mxu0 %v210
    %238 = vmatpush.msra.mxu0 %v209
    %239 = vmatpush.msra.mxu0 %v208
    %240 = vmatmul.f32.gmra.mxu0 %v204
    %v241 = vpop.f32.mrf.mxu0
    %v242 = vadd.f32 0.0, %v241
    %243 = vmatmul.f32.gmra.mxu0 %v205
    %v244 = vpop.f32.mrf.mxu0
    %v245 = vadd.f32 0.0, %v244
    %246 = vdwg.mxu0
    %v247 = vadd.f32 %v206, %v242
    %v248 = vadd.f32 %v207, %v245
    %249 = vst [vmem:[#allocation3] sm:$0xff] %v247
    %250 = vst [vmem:[#allocation3 + $0x8] sm:$0xff] %v248
    // Predicated region
    $region50: #{tpu_custom_call.1} parent=1 // pred_check
      %p251 = pneg %p88
    $region51: #{tpu_custom_call.1} parent=1 // pred_check_branch
      %253 = sbr.rel (%p251) target = $region53
    $region52: #{tpu_custom_call.1} parent=1 // pred_region
      %v254 = vld [vmem:[#allocation3] sm:$0xff]
      %v255 = vld [vmem:[#allocation3 + $0x8] sm:$0xff]
      %v256 = vld [vmem:[%s6] sm:$0x1]
      %v258 = vperm.slane %v256, 0
      %v260 = vadd.f32 %v254, %v258
      %v261 = vadd.f32 %v255, %v258
      %v262 = vld [vmem:[#allocation4] sm:$0xff]
      %v263 = vld [vmem:[#allocation4 + $0x8] sm:$0xff]
      %v264 = vadd.f32 %v260, %v262
      %v265 = vadd.f32 %v261, %v263
      %266 = vst [vmem:[#allocation12] sm:$0xff] %v264
      %267 = vst [vmem:[#allocation12 + $0x8] sm:$0xff] %v265
    $region53: #{tpu_custom_call.1} parent=1 // pred_fallthru
      _
    // Predicated region
    $region54: #{tpu_custom_call.1} parent=1 // pred_check
      _
    $region55: #{tpu_custom_call.1} parent=1 // pred_check_branch
      %269 = sbr.rel (0) target = $region57
    $region56: #{tpu_custom_call.1} parent=1 // pred_region
      %271 = vsyncadd [#allocation6], 0
      %s272 = sshll.u32 [#allocation12], 4
      %s273 = int_to_ptr.vmem [resolvable:$true] %s272
      %s274 = sshll.u32 %s7, 4
      %s275 = int_to_ptr.hbm [resolvable:$true] %s274
      %280 = dma.vmem_to_hbm [thread:$0]  %s273, 256, %s275, [#allocation6], 128, 128, 8
    $region57: #{tpu_custom_call.1} parent=1 // pred_fallthru
      _
    // Predicated region
    $region58: #{tpu_custom_call.1} parent=1 // pred_check
      _
    $region59: #{tpu_custom_call.1} parent=1 // pred_check_branch
      %282 = sbr.rel (0) target = $region61
    $region60: #{tpu_custom_call.1} parent=1 // pred_region
      %284 = dma.done [#allocation6], 256
    $region61: #{tpu_custom_call.1} parent=1 // pred_fallthru
      _
    %285 = vsyncpa [#allocation5], 1
    %286 = vsyncpa [#allocation8], 1
    %287 = vsyncpa [#allocation11], 1
    %288 = vsyncpa [#allocation6], 1

</llo_original>
